<compile_context>
chip_gen: v5e
topology: v5e:2x2
jax: 0.10.0
libtpu: 0.0.40
codegen_flags: <defaults>
</compile_context>

<pallas_src>
import functools

import jax
import jax.numpy as jnp
from jax.experimental import pallas as pl
from jax.experimental.pallas import tpu as pltpu


def _round_up(a, b):
    return ((a + b - 1) // b) * b


# Tile-VMEM budget (already includes the x2 double-buffer factor below).
# 12 MiB fits comfortably under every generation's scoped-VMEM default.
_TILE_VMEM_BUDGET = 12 * 1024 * 1024
_VMEM_LIMIT_BYTES = 32 * 1024 * 1024   # safe on v5e/v6e (128 MiB) and v7x (64 MiB)


def _pick_tm(Mp, B, Cin, Cout):
    """Largest 128-multiple divisor of Mp that fits the VMEM budget and keeps
    >=4 grid steps when there is enough work (pipeline depth + v7x megacore)."""
    # f32 bytes per mode-lane, double-buffered inputs + outputs.
    per_lane = 4 * 2 * (2 * B * Cin + 2 * Cin * Cout + 2 * B * Cout)
    cap = max(128, (_TILE_VMEM_BUDGET // per_lane) // 128 * 128)
    if Mp >= 4 * 128:
        cap = min(cap, Mp // 4)
    q = Mp // 128
    tm = 128
    for d in range(1, q + 1):
        cand = 128 * d
        if q % d == 0 and cand <= cap:
            tm = cand
    return tm


def _spectral_mix_kernel(x_ref, w_ref, o_ref):
    """Complex channel mixing for a block of frequency modes (modes on lanes).

    x_ref: (2, B, Cin, TM)     [0]=real, [1]=imag of x_ft at these modes
    w_ref: (2, Cin, Cout, TM)  [0]=wr,   [1]=wi
    o_ref: (2, B, Cout, TM)    [0]=real, [1]=imag of the mixed output

    out[b,o,m] = sum_i x[b,i,m] * W[i,o,m]   (complex), reduced over Cin via an
    explicit unrolled MAC loop — no (B,Cin,Cout,TM) intermediate.
    """
    B = x_ref.shape[1]
    Cin = x_ref.shape[2]
    Cout = o_ref.shape[2]
    TM = x_ref.shape[3]

    acc_r = jnp.zeros((B, Cout, TM), jnp.float32)
    acc_i = jnp.zeros((B, Cout, TM), jnp.float32)

    # Cin is small for FNO layers; static unroll keeps the LLO scheduler happy.
    for i in range(Cin):
        xr = x_ref[0, :, i, :]        # (B, TM)
        xi = x_ref[1, :, i, :]        # (B, TM)
        wr = w_ref[0, i]              # (Cout, TM)
        wi = w_ref[1, i]              # (Cout, TM)
        xr_b = xr[:, None, :]         # (B, 1, TM) -> broadcast over Cout sublanes
        xi_b = xi[:, None, :]
        wr_b = wr[None, :, :]         # (1, Cout, TM) -> broadcast over B
        wi_b = wi[None, :, :]
        # (xr + j*xi) * (wr + j*wi): plain 4-mult form (better cancellation,
        # VALU slack is free on an HBM-bound kernel).
        acc_r = acc_r + xr_b * wr_b - xi_b * wi_b
        acc_i = acc_i + xr_b * wi_b + xi_b * wr_b

    o_ref[0] = acc_r
    o_ref[1] = acc_i


def pack_spectral_weights(w1r, w1i, w2r, w2i):
    """Pack both mode-band weights once (outside the forward path).

    Returns (2, Cin, Cout, Mp) float32 with [0]=real, [1]=imag, modes flattened
    onto the (lane-padded) last axis: [top band ; bottom band].
    """
    Cin, Cout, modes1, modes2 = w1r.shape
    M = 2 * modes1 * modes2
    Mp = _round_up(M, 128)
    wr = jnp.concatenate([w1r, w2r], axis=2).reshape(Cin, Cout, M).astype(jnp.float32)
    wi = jnp.concatenate([w1i, w2i], axis=2).reshape(Cin, Cout, M).astype(jnp.float32)
    w_stk = jnp.stack([wr, wi])                                # (2, Cin, Cout, M)
    return jnp.pad(w_stk, ((0, 0), (0, 0), (0, 0), (0, Mp - M)))


def _compl_mul2d_pallas(x_bands, w_packed, modes1, modes2):
    """einsum('bixy,ioxy->boxy') on both mode bands at once via one Pallas call.

    x_bands:  (B, Cin, 2*modes1, modes2) complex64 -- [top ; bottom] concat.
    w_packed: (2, Cin, Cout, Mp) float32 from pack_spectral_weights.
    Returns   (B, Cout, 2*modes1, modes2) complex64.
    """
    B, Cin, mrows, _ = x_bands.shape
    Cout = w_packed.shape[2]
    Mp = w_packed.shape[3]
    M = mrows * modes2

    TM = _pick_tm(Mp, B, Cin, Cout)

    # x: stack real/imag on a leading axis, modes flattened onto the lane axis.
    x_flat = x_bands.reshape(B, Cin, M)
    x_ri = jnp.stack([jnp.real(x_flat), jnp.imag(x_flat)]).astype(jnp.float32)
    x_ri = jnp.pad(x_ri, ((0, 0), (0, 0), (0, 0), (0, Mp - M)))

    flops = 8 * B * Cin * Cout * Mp            # 4 mul + 4 add per (b,i,o,mode)
    bytes_acc = 4 * Mp * (2 * B * Cin + 2 * Cin * Cout + 2 * B * Cout)

    out = pl.pallas_call(
        _spectral_mix_kernel,
        out_shape=jax.ShapeDtypeStruct((2, B, Cout, Mp), jnp.float32),
        grid=(Mp // TM,),
        in_specs=[
            pl.BlockSpec((2, B, Cin, TM), lambda m: (0, 0, 0, m)),
            pl.BlockSpec((2, Cin, Cout, TM), lambda m: (0, 0, 0, m)),
        ],
        out_specs=pl.BlockSpec((2, B, Cout, TM), lambda m: (0, 0, 0, m)),
        compiler_params=pltpu.CompilerParams(
            dimension_semantics=("parallel",),
            vmem_limit_bytes=_VMEM_LIMIT_BYTES),
        cost_estimate=pl.CostEstimate(
            flops=flops, transcendentals=0, bytes_accessed=bytes_acc),
    )(x_ri, w_packed)

    out_c = (out[0, :, :, :M] + 1j * out[1, :, :, :M]).astype(jnp.complex64)
    return out_c.reshape(B, Cout, mrows, modes2)


@functools.partial(jax.jit, static_argnames=("modes1", "modes2"))
def spectral_conv2d(x, w_packed, *, modes1, modes2):
    """Forward pass of SpectralConv2d (size=None branch).

    x:        (B, Cin, H, W) float32.
    w_packed: output of pack_spectral_weights (hoisted out of the hot path).
    """
    B, Cin, H, W = x.shape
    Cout = w_packed.shape[2]
    Wf = W // 2 + 1

    x_ft = jnp.fft.rfft2(x)                                   # (B, Cin, H, Wf) c64

    # Concatenate the two retained bands -> one Pallas launch.
    x_bands = jnp.concatenate(
        [x_ft[:, :, :modes1, :modes2], x_ft[:, :, H - modes1:, :modes2]], axis=2)
    mixed = _compl_mul2d_pallas(x_bands, w_packed, modes1, modes2)
    top = mixed[:, :, :modes1]
    bot = mixed[:, :, modes1:]

    if H >= 2 * modes1:
        # Assemble out_ft with concat + pad (no full-size zeros + scatter).
        mid = jnp.zeros((B, Cout, H - 2 * modes1, modes2), dtype=jnp.complex64)
        band = jnp.concatenate([top, mid, bot], axis=2)       # (B, Cout, H, m2)
        out_ft = jnp.pad(band, ((0, 0), (0, 0), (0, 0), (0, Wf - modes2)))
    else:
        # Overlapping bands: match torch's overwrite semantics.
        out_ft = jnp.zeros((B, Cout, H, Wf), dtype=jnp.complex64)
        out_ft = out_ft.at[:, :, :modes1, :modes2].set(top)
        out_ft = out_ft.at[:, :, H - modes1:, :modes2].set(bot)

    return jnp.fft.irfft2(out_ft, s=(H, W))                   # (B, Cout, H, W) f32


def spectral_conv2d_ref(x, w1r, w1i, w2r, w2i, modes1, modes2):
    """Pure-JAX reference mirroring the PyTorch module, for correctness check."""
    B, Cin, H, W = x.shape
    Cout = w1r.shape[1]
    Wf = W // 2 + 1
    x_ft = jnp.fft.rfft2(x)
    w1 = (w1r + 1j * w1i).astype(jnp.complex64)
    w2 = (w2r + 1j * w2i).astype(jnp.complex64)
    out_ft = jnp.zeros((B, Cout, H, Wf), dtype=jnp.complex64)
    out_ft = out_ft.at[:, :, :modes1, :modes2].set(
        jnp.einsum('bixy,ioxy->boxy', x_ft[:, :, :modes1, :modes2], w1))
    out_ft = out_ft.at[:, :, H - modes1:, :modes2].set(
        jnp.einsum('bixy,ioxy->boxy', x_ft[:, :, H - modes1:, :modes2], w2))
    return jnp.fft.irfft2(out_ft, s=(H, W))


if __name__ == "__main__":
    # Small deterministic configuration consistent with the module.
    B, Cin, Cout, H, W = 2, 8, 8, 16, 16
    modes1, modes2 = 4, 4

    key = jax.random.PRNGKey(0)
    kx, k1, k2, k3, k4 = jax.random.split(key, 5)

    # nn.Parameter init: scale * uniform[0,1) for real and imaginary parts.
    scale = 1.0 / (Cin * Cout)
    x = jax.random.normal(kx, (B, Cin, H, W), dtype=jnp.float32)
    w1r = scale * jax.random.uniform(k1, (Cin, Cout, modes1, modes2), dtype=jnp.float32)
    w1i = scale * jax.random.uniform(k2, (Cin, Cout, modes1, modes2), dtype=jnp.float32)
    w2r = scale * jax.random.uniform(k3, (Cin, Cout, modes1, modes2), dtype=jnp.float32)
    w2i = scale * jax.random.uniform(k4, (Cin, Cout, modes1, modes2), dtype=jnp.float32)

    # Pack weights once (hoisted out of the forward path).
    w_packed = jax.block_until_ready(pack_spectral_weights(w1r, w1i, w2r, w2i))

    out = spectral_conv2d(x, w_packed, modes1=modes1, modes2=modes2)
    out = jax.block_until_ready(out)

    ref = spectral_conv2d_ref(x, w1r, w1i, w2r, w2i, modes1, modes2)
    assert out.shape == (B, Cout, H, W), out.shape
    assert jnp.allclose(out, ref, atol=1e-5, rtol=1e-5), "mismatch vs reference"

    print("KERNEL_OK")
</pallas_src>

<mosaic_0001>
module attributes {stable_mosaic.version = 11 : i64} {
  func.func @_spectral_mix_kernel(%arg0: i32, %arg1: memref<2x2x8x128xf32, #tpu.memory_space<vmem>>, %arg2: memref<2x8x8x128xf32, #tpu.memory_space<vmem>>, %arg3: memref<2x2x8x128xf32, #tpu.memory_space<vmem>>) attributes {dimension_semantics = [#tpu.dimension_semantics<parallel>], iteration_bounds = array<i64: 1>, scalar_prefetch = 0 : i64, scratch_operands = 0 : i64, tpu.core_type = #tpu.core_type<tc>, window_params = [{transform_indices = @transform_0, window_bounds = array<i64: 2, 2, 8, 128>}, {transform_indices = @transform_1, window_bounds = array<i64: 2, 8, 8, 128>}, {transform_indices = @transform_2, window_bounds = array<i64: 2, 2, 8, 128>}]} {
    %cst = arith.constant 0.000000e+00 : f32
    %0 = vector.broadcast %cst : f32 to vector<2x8x128xf32>
    %cst_0 = arith.constant 0.000000e+00 : f32
    %1 = vector.broadcast %cst_0 : f32 to vector<2x8x128xf32>
    %c0 = arith.constant 0 : index
    %c0_1 = arith.constant 0 : index
    %c0_2 = arith.constant 0 : index
    %c0_3 = arith.constant 0 : index
    %2 = vector.load %arg1[%c0, %c0_1, %c0_2, %c0_3] : memref<2x2x8x128xf32, #tpu.memory_space<vmem>>, vector<1x2x1x128xf32>
    %3 = vector.shape_cast %2 : vector<1x2x1x128xf32> to vector<2x128xf32>
    %c1 = arith.constant 1 : index
    %c0_4 = arith.constant 0 : index
    %c0_5 = arith.constant 0 : index
    %c0_6 = arith.constant 0 : index
    %4 = vector.load %arg1[%c1, %c0_4, %c0_5, %c0_6] : memref<2x2x8x128xf32, #tpu.memory_space<vmem>>, vector<1x2x1x128xf32>
    %5 = vector.shape_cast %4 : vector<1x2x1x128xf32> to vector<2x128xf32>
    %c0_7 = arith.constant 0 : index
    %c0_8 = arith.constant 0 : index
    %c0_9 = arith.constant 0 : index
    %c0_10 = arith.constant 0 : index
    %6 = vector.load %arg2[%c0_7, %c0_8, %c0_9, %c0_10] : memref<2x8x8x128xf32, #tpu.memory_space<vmem>>, vector<1x1x8x128xf32>
    %7 = vector.shape_cast %6 : vector<1x1x8x128xf32> to vector<8x128xf32>
    %c1_11 = arith.constant 1 : index
    %c0_12 = arith.constant 0 : index
    %c0_13 = arith.constant 0 : index
    %c0_14 = arith.constant 0 : index
    %8 = vector.load %arg2[%c1_11, %c0_12, %c0_13, %c0_14] : memref<2x8x8x128xf32, #tpu.memory_space<vmem>>, vector<1x1x8x128xf32>
    %9 = vector.shape_cast %8 : vector<1x1x8x128xf32> to vector<8x128xf32>
    %10 = vector.shape_cast %3 : vector<2x128xf32> to vector<2x1x128xf32>
    %11 = vector.shape_cast %5 : vector<2x128xf32> to vector<2x1x128xf32>
    %12 = vector.shape_cast %7 : vector<8x128xf32> to vector<1x8x128xf32>
    %13 = vector.shape_cast %9 : vector<8x128xf32> to vector<1x8x128xf32>
    %14 = vector.broadcast %10 : vector<2x1x128xf32> to vector<2x8x128xf32>
    %15 = vector.broadcast %12 : vector<1x8x128xf32> to vector<2x8x128xf32>
    %16 = arith.mulf %14, %15 : vector<2x8x128xf32>
    %17 = arith.addf %0, %16 : vector<2x8x128xf32>
    %18 = vector.broadcast %11 : vector<2x1x128xf32> to vector<2x8x128xf32>
    %19 = vector.broadcast %13 : vector<1x8x128xf32> to vector<2x8x128xf32>
    %20 = arith.mulf %18, %19 : vector<2x8x128xf32>
    %21 = arith.subf %17, %20 : vector<2x8x128xf32>
    %22 = vector.broadcast %10 : vector<2x1x128xf32> to vector<2x8x128xf32>
    %23 = vector.broadcast %13 : vector<1x8x128xf32> to vector<2x8x128xf32>
    %24 = arith.mulf %22, %23 : vector<2x8x128xf32>
    %25 = arith.addf %1, %24 : vector<2x8x128xf32>
    %26 = vector.broadcast %11 : vector<2x1x128xf32> to vector<2x8x128xf32>
    %27 = vector.broadcast %12 : vector<1x8x128xf32> to vector<2x8x128xf32>
    %28 = arith.mulf %26, %27 : vector<2x8x128xf32>
    %29 = arith.addf %25, %28 : vector<2x8x128xf32>
    %c0_15 = arith.constant 0 : index
    %c0_16 = arith.constant 0 : index
    %c1_17 = arith.constant 1 : index
    %c0_18 = arith.constant 0 : index
    %30 = vector.load %arg1[%c0_15, %c0_16, %c1_17, %c0_18] : memref<2x2x8x128xf32, #tpu.memory_space<vmem>>, vector<1x2x1x128xf32>
    %31 = vector.shape_cast %30 : vector<1x2x1x128xf32> to vector<2x128xf32>
    %c1_19 = arith.constant 1 : index
    %c0_20 = arith.constant 0 : index
    %c1_21 = arith.constant 1 : index
    %c0_22 = arith.constant 0 : index
    %32 = vector.load %arg1[%c1_19, %c0_20, %c1_21, %c0_22] : memref<2x2x8x128xf32, #tpu.memory_space<vmem>>, vector<1x2x1x128xf32>
    %33 = vector.shape_cast %32 : vector<1x2x1x128xf32> to vector<2x128xf32>
    %c0_23 = arith.constant 0 : index
    %c1_24 = arith.constant 1 : index
    %c0_25 = arith.constant 0 : index
    %c0_26 = arith.constant 0 : index
    %34 = vector.load %arg2[%c0_23, %c1_24, %c0_25, %c0_26] : memref<2x8x8x128xf32, #tpu.memory_space<vmem>>, vector<1x1x8x128xf32>
    %35 = vector.shape_cast %34 : vector<1x1x8x128xf32> to vector<8x128xf32>
    %c1_27 = arith.constant 1 : index
    %c1_28 = arith.constant 1 : index
    %c0_29 = arith.constant 0 : index
    %c0_30 = arith.constant 0 : index
    %36 = vector.load %arg2[%c1_27, %c1_28, %c0_29, %c0_30] : memref<2x8x8x128xf32, #tpu.memory_space<vmem>>, vector<1x1x8x128xf32>
    %37 = vector.shape_cast %36 : vector<1x1x8x128xf32> to vector<8x128xf32>
    %38 = vector.shape_cast %31 : vector<2x128xf32> to vector<2x1x128xf32>
    %39 = vector.shape_cast %33 : vector<2x128xf32> to vector<2x1x128xf32>
    %40 = vector.shape_cast %35 : vector<8x128xf32> to vector<1x8x128xf32>
    %41 = vector.shape_cast %37 : vector<8x128xf32> to vector<1x8x128xf32>
    %42 = vector.broadcast %38 : vector<2x1x128xf32> to vector<2x8x128xf32>
    %43 = vector.broadcast %40 : vector<1x8x128xf32> to vector<2x8x128xf32>
    %44 = arith.mulf %42, %43 : vector<2x8x128xf32>
    %45 = arith.addf %21, %44 : vector<2x8x128xf32>
    %46 = vector.broadcast %39 : vector<2x1x128xf32> to vector<2x8x128xf32>
    %47 = vector.broadcast %41 : vector<1x8x128xf32> to vector<2x8x128xf32>
    %48 = arith.mulf %46, %47 : vector<2x8x128xf32>
    %49 = arith.subf %45, %48 : vector<2x8x128xf32>
    %50 = vector.broadcast %38 : vector<2x1x128xf32> to vector<2x8x128xf32>
    %51 = vector.broadcast %41 : vector<1x8x128xf32> to vector<2x8x128xf32>
    %52 = arith.mulf %50, %51 : vector<2x8x128xf32>
    %53 = arith.addf %29, %52 : vector<2x8x128xf32>
    %54 = vector.broadcast %39 : vector<2x1x128xf32> to vector<2x8x128xf32>
    %55 = vector.broadcast %40 : vector<1x8x128xf32> to vector<2x8x128xf32>
    %56 = arith.mulf %54, %55 : vector<2x8x128xf32>
    %57 = arith.addf %53, %56 : vector<2x8x128xf32>
    %c0_31 = arith.constant 0 : index
    %c0_32 = arith.constant 0 : index
    %c2 = arith.constant 2 : index
    %c0_33 = arith.constant 0 : index
    %58 = vector.load %arg1[%c0_31, %c0_32, %c2, %c0_33] : memref<2x2x8x128xf32, #tpu.memory_space<vmem>>, vector<1x2x1x128xf32>
    %59 = vector.shape_cast %58 : vector<1x2x1x128xf32> to vector<2x128xf32>
    %c1_34 = arith.constant 1 : index
    %c0_35 = arith.constant 0 : index
    %c2_36 = arith.constant 2 : index
    %c0_37 = arith.constant 0 : index
    %60 = vector.load %arg1[%c1_34, %c0_35, %c2_36, %c0_37] : memref<2x2x8x128xf32, #tpu.memory_space<vmem>>, vector<1x2x1x128xf32>
    %61 = vector.shape_cast %60 : vector<1x2x1x128xf32> to vector<2x128xf32>
    %c0_38 = arith.constant 0 : index
    %c2_39 = arith.constant 2 : index
    %c0_40 = arith.constant 0 : index
    %c0_41 = arith.constant 0 : index
    %62 = vector.load %arg2[%c0_38, %c2_39, %c0_40, %c0_41] : memref<2x8x8x128xf32, #tpu.memory_space<vmem>>, vector<1x1x8x128xf32>
    %63 = vector.shape_cast %62 : vector<1x1x8x128xf32> to vector<8x128xf32>
    %c1_42 = arith.constant 1 : index
    %c2_43 = arith.constant 2 : index
    %c0_44 = arith.constant 0 : index
    %c0_45 = arith.constant 0 : index
    %64 = vector.load %arg2[%c1_42, %c2_43, %c0_44, %c0_45] : memref<2x8x8x128xf32, #tpu.memory_space<vmem>>, vector<1x1x8x128xf32>
    %65 = vector.shape_cast %64 : vector<1x1x8x128xf32> to vector<8x128xf32>
    %66 = vector.shape_cast %59 : vector<2x128xf32> to vector<2x1x128xf32>
    %67 = vector.shape_cast %61 : vector<2x128xf32> to vector<2x1x128xf32>
    %68 = vector.shape_cast %63 : vector<8x128xf32> to vector<1x8x128xf32>
    %69 = vector.shape_cast %65 : vector<8x128xf32> to vector<1x8x128xf32>
    %70 = vector.broadcast %66 : vector<2x1x128xf32> to vector<2x8x128xf32>
    %71 = vector.broadcast %68 : vector<1x8x128xf32> to vector<2x8x128xf32>
    %72 = arith.mulf %70, %71 : vector<2x8x128xf32>
    %73 = arith.addf %49, %72 : vector<2x8x128xf32>
    %74 = vector.broadcast %67 : vector<2x1x128xf32> to vector<2x8x128xf32>
    %75 = vector.broadcast %69 : vector<1x8x128xf32> to vector<2x8x128xf32>
    %76 = arith.mulf %74, %75 : vector<2x8x128xf32>
    %77 = arith.subf %73, %76 : vector<2x8x128xf32>
    %78 = vector.broadcast %66 : vector<2x1x128xf32> to vector<2x8x128xf32>
    %79 = vector.broadcast %69 : vector<1x8x128xf32> to vector<2x8x128xf32>
    %80 = arith.mulf %78, %79 : vector<2x8x128xf32>
    %81 = arith.addf %57, %80 : vector<2x8x128xf32>
    %82 = vector.broadcast %67 : vector<2x1x128xf32> to vector<2x8x128xf32>
    %83 = vector.broadcast %68 : vector<1x8x128xf32> to vector<2x8x128xf32>
    %84 = arith.mulf %82, %83 : vector<2x8x128xf32>
    %85 = arith.addf %81, %84 : vector<2x8x128xf32>
    %c0_46 = arith.constant 0 : index
    %c0_47 = arith.constant 0 : index
    %c3 = arith.constant 3 : index
    %c0_48 = arith.constant 0 : index
    %86 = vector.load %arg1[%c0_46, %c0_47, %c3, %c0_48] : memref<2x2x8x128xf32, #tpu.memory_space<vmem>>, vector<1x2x1x128xf32>
    %87 = vector.shape_cast %86 : vector<1x2x1x128xf32> to vector<2x128xf32>
    %c1_49 = arith.constant 1 : index
    %c0_50 = arith.constant 0 : index
    %c3_51 = arith.constant 3 : index
    %c0_52 = arith.constant 0 : index
    %88 = vector.load %arg1[%c1_49, %c0_50, %c3_51, %c0_52] : memref<2x2x8x128xf32, #tpu.memory_space<vmem>>, vector<1x2x1x128xf32>
    %89 = vector.shape_cast %88 : vector<1x2x1x128xf32> to vector<2x128xf32>
    %c0_53 = arith.constant 0 : index
    %c3_54 = arith.constant 3 : index
    %c0_55 = arith.constant 0 : index
    %c0_56 = arith.constant 0 : index
    %90 = vector.load %arg2[%c0_53, %c3_54, %c0_55, %c0_56] : memref<2x8x8x128xf32, #tpu.memory_space<vmem>>, vector<1x1x8x128xf32>
    %91 = vector.shape_cast %90 : vector<1x1x8x128xf32> to vector<8x128xf32>
    %c1_57 = arith.constant 1 : index
    %c3_58 = arith.constant 3 : index
    %c0_59 = arith.constant 0 : index
    %c0_60 = arith.constant 0 : index
    %92 = vector.load %arg2[%c1_57, %c3_58, %c0_59, %c0_60] : memref<2x8x8x128xf32, #tpu.memory_space<vmem>>, vector<1x1x8x128xf32>
    %93 = vector.shape_cast %92 : vector<1x1x8x128xf32> to vector<8x128xf32>
    %94 = vector.shape_cast %87 : vector<2x128xf32> to vector<2x1x128xf32>
    %95 = vector.shape_cast %89 : vector<2x128xf32> to vector<2x1x128xf32>
    %96 = vector.shape_cast %91 : vector<8x128xf32> to vector<1x8x128xf32>
    %97 = vector.shape_cast %93 : vector<8x128xf32> to vector<1x8x128xf32>
    %98 = vector.broadcast %94 : vector<2x1x128xf32> to vector<2x8x128xf32>
    %99 = vector.broadcast %96 : vector<1x8x128xf32> to vector<2x8x128xf32>
    %100 = arith.mulf %98, %99 : vector<2x8x128xf32>
    %101 = arith.addf %77, %100 : vector<2x8x128xf32>
    %102 = vector.broadcast %95 : vector<2x1x128xf32> to vector<2x8x128xf32>
    %103 = vector.broadcast %97 : vector<1x8x128xf32> to vector<2x8x128xf32>
    %104 = arith.mulf %102, %103 : vector<2x8x128xf32>
    %105 = arith.subf %101, %104 : vector<2x8x128xf32>
    %106 = vector.broadcast %94 : vector<2x1x128xf32> to vector<2x8x128xf32>
    %107 = vector.broadcast %97 : vector<1x8x128xf32> to vector<2x8x128xf32>
    %108 = arith.mulf %106, %107 : vector<2x8x128xf32>
    %109 = arith.addf %85, %108 : vector<2x8x128xf32>
    %110 = vector.broadcast %95 : vector<2x1x128xf32> to vector<2x8x128xf32>
    %111 = vector.broadcast %96 : vector<1x8x128xf32> to vector<2x8x128xf32>
    %112 = arith.mulf %110, %111 : vector<2x8x128xf32>
    %113 = arith.addf %109, %112 : vector<2x8x128xf32>
    %c0_61 = arith.constant 0 : index
    %c0_62 = arith.constant 0 : index
    %c4 = arith.constant 4 : index
    %c0_63 = arith.constant 0 : index
    %114 = vector.load %arg1[%c0_61, %c0_62, %c4, %c0_63] : memref<2x2x8x128xf32, #tpu.memory_space<vmem>>, vector<1x2x1x128xf32>
    %115 = vector.shape_cast %114 : vector<1x2x1x128xf32> to vector<2x128xf32>
    %c1_64 = arith.constant 1 : index
    %c0_65 = arith.constant 0 : index
    %c4_66 = arith.constant 4 : index
    %c0_67 = arith.constant 0 : index
    %116 = vector.load %arg1[%c1_64, %c0_65, %c4_66, %c0_67] : memref<2x2x8x128xf32, #tpu.memory_space<vmem>>, vector<1x2x1x128xf32>
    %117 = vector.shape_cast %116 : vector<1x2x1x128xf32> to vector<2x128xf32>
    %c0_68 = arith.constant 0 : index
    %c4_69 = arith.constant 4 : index
    %c0_70 = arith.constant 0 : index
    %c0_71 = arith.constant 0 : index
    %118 = vector.load %arg2[%c0_68, %c4_69, %c0_70, %c0_71] : memref<2x8x8x128xf32, #tpu.memory_space<vmem>>, vector<1x1x8x128xf32>
    %119 = vector.shape_cast %118 : vector<1x1x8x128xf32> to vector<8x128xf32>
    %c1_72 = arith.constant 1 : index
    %c4_73 = arith.constant 4 : index
    %c0_74 = arith.constant 0 : index
    %c0_75 = arith.constant 0 : index
    %120 = vector.load %arg2[%c1_72, %c4_73, %c0_74, %c0_75] : memref<2x8x8x128xf32, #tpu.memory_space<vmem>>, vector<1x1x8x128xf32>
    %121 = vector.shape_cast %120 : vector<1x1x8x128xf32> to vector<8x128xf32>
    %122 = vector.shape_cast %115 : vector<2x128xf32> to vector<2x1x128xf32>
    %123 = vector.shape_cast %117 : vector<2x128xf32> to vector<2x1x128xf32>
    %124 = vector.shape_cast %119 : vector<8x128xf32> to vector<1x8x128xf32>
    %125 = vector.shape_cast %121 : vector<8x128xf32> to vector<1x8x128xf32>
    %126 = vector.broadcast %122 : vector<2x1x128xf32> to vector<2x8x128xf32>
    %127 = vector.broadcast %124 : vector<1x8x128xf32> to vector<2x8x128xf32>
    %128 = arith.mulf %126, %127 : vector<2x8x128xf32>
    %129 = arith.addf %105, %128 : vector<2x8x128xf32>
    %130 = vector.broadcast %123 : vector<2x1x128xf32> to vector<2x8x128xf32>
    %131 = vector.broadcast %125 : vector<1x8x128xf32> to vector<2x8x128xf32>
    %132 = arith.mulf %130, %131 : vector<2x8x128xf32>
    %133 = arith.subf %129, %132 : vector<2x8x128xf32>
    %134 = vector.broadcast %122 : vector<2x1x128xf32> to vector<2x8x128xf32>
    %135 = vector.broadcast %125 : vector<1x8x128xf32> to vector<2x8x128xf32>
    %136 = arith.mulf %134, %135 : vector<2x8x128xf32>
    %137 = arith.addf %113, %136 : vector<2x8x128xf32>
    %138 = vector.broadcast %123 : vector<2x1x128xf32> to vector<2x8x128xf32>
    %139 = vector.broadcast %124 : vector<1x8x128xf32> to vector<2x8x128xf32>
    %140 = arith.mulf %138, %139 : vector<2x8x128xf32>
    %141 = arith.addf %137, %140 : vector<2x8x128xf32>
    %c0_76 = arith.constant 0 : index
    %c0_77 = arith.constant 0 : index
    %c5 = arith.constant 5 : index
    %c0_78 = arith.constant 0 : index
    %142 = vector.load %arg1[%c0_76, %c0_77, %c5, %c0_78] : memref<2x2x8x128xf32, #tpu.memory_space<vmem>>, vector<1x2x1x128xf32>
    %143 = vector.shape_cast %142 : vector<1x2x1x128xf32> to vector<2x128xf32>
    %c1_79 = arith.constant 1 : index
    %c0_80 = arith.constant 0 : index
    %c5_81 = arith.constant 5 : index
    %c0_82 = arith.constant 0 : index
    %144 = vector.load %arg1[%c1_79, %c0_80, %c5_81, %c0_82] : memref<2x2x8x128xf32, #tpu.memory_space<vmem>>, vector<1x2x1x128xf32>
    %145 = vector.shape_cast %144 : vector<1x2x1x128xf32> to vector<2x128xf32>
    %c0_83 = arith.constant 0 : index
    %c5_84 = arith.constant 5 : index
    %c0_85 = arith.constant 0 : index
    %c0_86 = arith.constant 0 : index
    %146 = vector.load %arg2[%c0_83, %c5_84, %c0_85, %c0_86] : memref<2x8x8x128xf32, #tpu.memory_space<vmem>>, vector<1x1x8x128xf32>
    %147 = vector.shape_cast %146 : vector<1x1x8x128xf32> to vector<8x128xf32>
    %c1_87 = arith.constant 1 : index
    %c5_88 = arith.constant 5 : index
    %c0_89 = arith.constant 0 : index
    %c0_90 = arith.constant 0 : index
    %148 = vector.load %arg2[%c1_87, %c5_88, %c0_89, %c0_90] : memref<2x8x8x128xf32, #tpu.memory_space<vmem>>, vector<1x1x8x128xf32>
    %149 = vector.shape_cast %148 : vector<1x1x8x128xf32> to vector<8x128xf32>
    %150 = vector.shape_cast %143 : vector<2x128xf32> to vector<2x1x128xf32>
    %151 = vector.shape_cast %145 : vector<2x128xf32> to vector<2x1x128xf32>
    %152 = vector.shape_cast %147 : vector<8x128xf32> to vector<1x8x128xf32>
    %153 = vector.shape_cast %149 : vector<8x128xf32> to vector<1x8x128xf32>
    %154 = vector.broadcast %150 : vector<2x1x128xf32> to vector<2x8x128xf32>
    %155 = vector.broadcast %152 : vector<1x8x128xf32> to vector<2x8x128xf32>
    %156 = arith.mulf %154, %155 : vector<2x8x128xf32>
    %157 = arith.addf %133, %156 : vector<2x8x128xf32>
    %158 = vector.broadcast %151 : vector<2x1x128xf32> to vector<2x8x128xf32>
    %159 = vector.broadcast %153 : vector<1x8x128xf32> to vector<2x8x128xf32>
    %160 = arith.mulf %158, %159 : vector<2x8x128xf32>
    %161 = arith.subf %157, %160 : vector<2x8x128xf32>
    %162 = vector.broadcast %150 : vector<2x1x128xf32> to vector<2x8x128xf32>
    %163 = vector.broadcast %153 : vector<1x8x128xf32> to vector<2x8x128xf32>
    %164 = arith.mulf %162, %163 : vector<2x8x128xf32>
    %165 = arith.addf %141, %164 : vector<2x8x128xf32>
    %166 = vector.broadcast %151 : vector<2x1x128xf32> to vector<2x8x128xf32>
    %167 = vector.broadcast %152 : vector<1x8x128xf32> to vector<2x8x128xf32>
    %168 = arith.mulf %166, %167 : vector<2x8x128xf32>
    %169 = arith.addf %165, %168 : vector<2x8x128xf32>
    %c0_91 = arith.constant 0 : index
    %c0_92 = arith.constant 0 : index
    %c6 = arith.constant 6 : index
    %c0_93 = arith.constant 0 : index
    %170 = vector.load %arg1[%c0_91, %c0_92, %c6, %c0_93] : memref<2x2x8x128xf32, #tpu.memory_space<vmem>>, vector<1x2x1x128xf32>
    %171 = vector.shape_cast %170 : vector<1x2x1x128xf32> to vector<2x128xf32>
    %c1_94 = arith.constant 1 : index
    %c0_95 = arith.constant 0 : index
    %c6_96 = arith.constant 6 : index
    %c0_97 = arith.constant 0 : index
    %172 = vector.load %arg1[%c1_94, %c0_95, %c6_96, %c0_97] : memref<2x2x8x128xf32, #tpu.memory_space<vmem>>, vector<1x2x1x128xf32>
    %173 = vector.shape_cast %172 : vector<1x2x1x128xf32> to vector<2x128xf32>
    %c0_98 = arith.constant 0 : index
    %c6_99 = arith.constant 6 : index
    %c0_100 = arith.constant 0 : index
    %c0_101 = arith.constant 0 : index
    %174 = vector.load %arg2[%c0_98, %c6_99, %c0_100, %c0_101] : memref<2x8x8x128xf32, #tpu.memory_space<vmem>>, vector<1x1x8x128xf32>
    %175 = vector.shape_cast %174 : vector<1x1x8x128xf32> to vector<8x128xf32>
    %c1_102 = arith.constant 1 : index
    %c6_103 = arith.constant 6 : index
    %c0_104 = arith.constant 0 : index
    %c0_105 = arith.constant 0 : index
    %176 = vector.load %arg2[%c1_102, %c6_103, %c0_104, %c0_105] : memref<2x8x8x128xf32, #tpu.memory_space<vmem>>, vector<1x1x8x128xf32>
    %177 = vector.shape_cast %176 : vector<1x1x8x128xf32> to vector<8x128xf32>
    %178 = vector.shape_cast %171 : vector<2x128xf32> to vector<2x1x128xf32>
    %179 = vector.shape_cast %173 : vector<2x128xf32> to vector<2x1x128xf32>
    %180 = vector.shape_cast %175 : vector<8x128xf32> to vector<1x8x128xf32>
    %181 = vector.shape_cast %177 : vector<8x128xf32> to vector<1x8x128xf32>
    %182 = vector.broadcast %178 : vector<2x1x128xf32> to vector<2x8x128xf32>
    %183 = vector.broadcast %180 : vector<1x8x128xf32> to vector<2x8x128xf32>
    %184 = arith.mulf %182, %183 : vector<2x8x128xf32>
    %185 = arith.addf %161, %184 : vector<2x8x128xf32>
    %186 = vector.broadcast %179 : vector<2x1x128xf32> to vector<2x8x128xf32>
    %187 = vector.broadcast %181 : vector<1x8x128xf32> to vector<2x8x128xf32>
    %188 = arith.mulf %186, %187 : vector<2x8x128xf32>
    %189 = arith.subf %185, %188 : vector<2x8x128xf32>
    %190 = vector.broadcast %178 : vector<2x1x128xf32> to vector<2x8x128xf32>
    %191 = vector.broadcast %181 : vector<1x8x128xf32> to vector<2x8x128xf32>
    %192 = arith.mulf %190, %191 : vector<2x8x128xf32>
    %193 = arith.addf %169, %192 : vector<2x8x128xf32>
    %194 = vector.broadcast %179 : vector<2x1x128xf32> to vector<2x8x128xf32>
    %195 = vector.broadcast %180 : vector<1x8x128xf32> to vector<2x8x128xf32>
    %196 = arith.mulf %194, %195 : vector<2x8x128xf32>
    %197 = arith.addf %193, %196 : vector<2x8x128xf32>
    %c0_106 = arith.constant 0 : index
    %c0_107 = arith.constant 0 : index
    %c7 = arith.constant 7 : index
    %c0_108 = arith.constant 0 : index
    %198 = vector.load %arg1[%c0_106, %c0_107, %c7, %c0_108] : memref<2x2x8x128xf32, #tpu.memory_space<vmem>>, vector<1x2x1x128xf32>
    %199 = vector.shape_cast %198 : vector<1x2x1x128xf32> to vector<2x128xf32>
    %c1_109 = arith.constant 1 : index
    %c0_110 = arith.constant 0 : index
    %c7_111 = arith.constant 7 : index
    %c0_112 = arith.constant 0 : index
    %200 = vector.load %arg1[%c1_109, %c0_110, %c7_111, %c0_112] : memref<2x2x8x128xf32, #tpu.memory_space<vmem>>, vector<1x2x1x128xf32>
    %201 = vector.shape_cast %200 : vector<1x2x1x128xf32> to vector<2x128xf32>
    %c0_113 = arith.constant 0 : index
    %c7_114 = arith.constant 7 : index
    %c0_115 = arith.constant 0 : index
    %c0_116 = arith.constant 0 : index
    %202 = vector.load %arg2[%c0_113, %c7_114, %c0_115, %c0_116] : memref<2x8x8x128xf32, #tpu.memory_space<vmem>>, vector<1x1x8x128xf32>
    %203 = vector.shape_cast %202 : vector<1x1x8x128xf32> to vector<8x128xf32>
    %c1_117 = arith.constant 1 : index
    %c7_118 = arith.constant 7 : index
    %c0_119 = arith.constant 0 : index
    %c0_120 = arith.constant 0 : index
    %204 = vector.load %arg2[%c1_117, %c7_118, %c0_119, %c0_120] : memref<2x8x8x128xf32, #tpu.memory_space<vmem>>, vector<1x1x8x128xf32>
    %205 = vector.shape_cast %204 : vector<1x1x8x128xf32> to vector<8x128xf32>
    %206 = vector.shape_cast %199 : vector<2x128xf32> to vector<2x1x128xf32>
    %207 = vector.shape_cast %201 : vector<2x128xf32> to vector<2x1x128xf32>
    %208 = vector.shape_cast %203 : vector<8x128xf32> to vector<1x8x128xf32>
    %209 = vector.shape_cast %205 : vector<8x128xf32> to vector<1x8x128xf32>
    %210 = vector.broadcast %206 : vector<2x1x128xf32> to vector<2x8x128xf32>
    %211 = vector.broadcast %208 : vector<1x8x128xf32> to vector<2x8x128xf32>
    %212 = arith.mulf %210, %211 : vector<2x8x128xf32>
    %213 = arith.addf %189, %212 : vector<2x8x128xf32>
    %214 = vector.broadcast %207 : vector<2x1x128xf32> to vector<2x8x128xf32>
    %215 = vector.broadcast %209 : vector<1x8x128xf32> to vector<2x8x128xf32>
    %216 = arith.mulf %214, %215 : vector<2x8x128xf32>
    %217 = arith.subf %213, %216 : vector<2x8x128xf32>
    %218 = vector.broadcast %206 : vector<2x1x128xf32> to vector<2x8x128xf32>
    %219 = vector.broadcast %209 : vector<1x8x128xf32> to vector<2x8x128xf32>
    %220 = arith.mulf %218, %219 : vector<2x8x128xf32>
    %221 = arith.addf %197, %220 : vector<2x8x128xf32>
    %222 = vector.broadcast %207 : vector<2x1x128xf32> to vector<2x8x128xf32>
    %223 = vector.broadcast %208 : vector<1x8x128xf32> to vector<2x8x128xf32>
    %224 = arith.mulf %222, %223 : vector<2x8x128xf32>
    %225 = arith.addf %221, %224 : vector<2x8x128xf32>
    %c0_121 = arith.constant 0 : index
    %c0_122 = arith.constant 0 : index
    %c0_123 = arith.constant 0 : index
    %c0_124 = arith.constant 0 : index
    %226 = vector.load %arg3[%c0_121, %c0_122, %c0_123, %c0_124] : memref<2x2x8x128xf32, #tpu.memory_space<vmem>>, vector<1x2x8x128xf32>
    %227 = vector.shape_cast %226 : vector<1x2x8x128xf32> to vector<2x8x128xf32>
    %228 = vector.shape_cast %217 : vector<2x8x128xf32> to vector<1x2x8x128xf32>
    tpu.vector_store %arg3[%c0_121, %c0_122, %c0_123, %c0_124], %228 {strides = array<i32>} : memref<2x2x8x128xf32, #tpu.memory_space<vmem>>, vector<1x2x8x128xf32>,
    %c1_125 = arith.constant 1 : index
    %c0_126 = arith.constant 0 : index
    %c0_127 = arith.constant 0 : index
    %c0_128 = arith.constant 0 : index
    %229 = vector.load %arg3[%c1_125, %c0_126, %c0_127, %c0_128] : memref<2x2x8x128xf32, #tpu.memory_space<vmem>>, vector<1x2x8x128xf32>
    %230 = vector.shape_cast %229 : vector<1x2x8x128xf32> to vector<2x8x128xf32>
    %231 = vector.shape_cast %225 : vector<2x8x128xf32> to vector<1x2x8x128xf32>
    tpu.vector_store %arg3[%c1_125, %c0_126, %c0_127, %c0_128], %231 {strides = array<i32>} : memref<2x2x8x128xf32, #tpu.memory_space<vmem>>, vector<1x2x8x128xf32>,
    return
  }
  func.func @transform_0(%arg0: i32) -> (i32, i32, i32, i32) {
    %c0_i32 = arith.constant 0 : i32
    %c0_i32_0 = arith.constant 0 : i32
    %c0_i32_1 = arith.constant 0 : i32
    %c0_i32_2 = arith.constant 0 : i32
    return %c0_i32, %c0_i32_0, %c0_i32_1, %arg0 : i32, i32, i32, i32
  }
  func.func @transform_1(%arg0: i32) -> (i32, i32, i32, i32) {
    %c0_i32 = arith.constant 0 : i32
    %c0_i32_0 = arith.constant 0 : i32
    %c0_i32_1 = arith.constant 0 : i32
    %c0_i32_2 = arith.constant 0 : i32
    return %c0_i32, %c0_i32_0, %c0_i32_1, %arg0 : i32, i32, i32, i32
  }
  func.func @transform_2(%arg0: i32) -> (i32, i32, i32, i32) {
    %c0_i32 = arith.constant 0 : i32
    %c0_i32_0 = arith.constant 0 : i32
    %c0_i32_1 = arith.constant 0 : i32
    %c0_i32_2 = arith.constant 0 : i32
    return %c0_i32, %c0_i32_0, %c0_i32_1, %arg0 : i32, i32, i32, i32
  }
}

</mosaic_0001>

<llo_original>
// kernel: spectral_conv2d.1
$region0: #{spectral_conv2d.1}
  #allocation0 [shape = 'u32[]', space=smem, size = 0x4, offset = 0x4, fixed_abs, tag = 'smem constant byte address 0x4 - core index']
  #allocation1 [shape = 'u32[72,128]{1,0:T(1,128)}', space=vmem, size = 0x9000, scoped, tag = 'internal scratch']
  %s0 = inlined_call_operand.vmem [shape: f32[2,2,8,128], index: 0, kind: input, shape index: {}]
  %s1 = inlined_call_operand.vmem [shape: f32[2,8,8,128], index: 1, kind: input, shape index: {}]
  %s2 = inlined_call_operand.vmem [shape: f32[2,2,8,128], index: 2, kind: output, shape index: {}]
  %s3 = sld [smem:[#allocation0]]
  $region18: #{spectral_conv2d.1} parent=0
    _
  %s5 = ssub.s32 1, %s3
  %s6 = scalar_select 0, %s5, %s3
  // Predicated region
  $region2: #{spectral_conv2d.1} parent=0 // pred_check
    _
  $region3: #{spectral_conv2d.1} parent=0 // pred_check_branch
    %8 = sbr.rel (0) target = $region5
  $region4: #{spectral_conv2d.1} parent=0 // pred_region
    _
  $region5: #{spectral_conv2d.1} parent=0 // pred_fallthru
    _
  // Predicated region
  $region6: #{spectral_conv2d.1} parent=0 // pred_check
    _
  $region7: #{spectral_conv2d.1} parent=0 // pred_check_branch
    %10 = sbr.rel (0) target = $region9
  $region8: #{spectral_conv2d.1} parent=0 // pred_region
    _
  $region9: #{spectral_conv2d.1} parent=0 // pred_fallthru
    _
  %v11 = vld [vmem:[%s0] sm:$0x1]
  %v12 = vld [vmem:[%s0 + $0x8] sm:$0x1]
  %s13 = scalar_lea.vmem %s0, 16
  %v14 = vld [vmem:[%s13] sm:$0x1]
  %v15 = vld [vmem:[%s13 + $0x8] sm:$0x1]
  %v16 = vld [vmem:[%s1] sm:$0xff]
  %s17 = scalar_lea.vmem %s1, 64
  %v18 = vld [vmem:[%s17] sm:$0xff]
  %v19 = vperm.slane %v11, 0
  %v20 = vperm.slane %v12, 0
  %v21 = vmul.f32 %v19, %v16
  %v22 = vmul.f32 %v20, %v16
  %v23 = vadd.f32 %v21, 0.0
  %v24 = vadd.f32 %v22, 0.0
  %v25 = vperm.slane %v14, 0
  %v26 = vperm.slane %v15, 0
  %v27 = vmul.f32 %v25, %v18
  %v28 = vmul.f32 %v26, %v18
  %v29 = vsub.f32 %v23, %v27
  %v30 = vsub.f32 %v24, %v28
  %v31 = vmul.f32 %v19, %v18
  %v32 = vmul.f32 %v20, %v18
  %v33 = vadd.f32 %v31, 0.0
  %v34 = vadd.f32 %v32, 0.0
  %v35 = vmul.f32 %v25, %v16
  %v36 = vmul.f32 %v26, %v16
  %v37 = vadd.f32 %v33, %v35
  %v38 = vadd.f32 %v34, %v36
  %v39 = vld [vmem:[%s0 + $0x1] sm:$0x1]
  %v40 = vld [vmem:[%s0 + $0x9] sm:$0x1]
  %v41 = vld [vmem:[%s13 + $0x1] sm:$0x1]
  %v42 = vld [vmem:[%s13 + $0x9] sm:$0x1]
  %s43 = scalar_lea.vmem %s1, 8
  %v44 = vld [vmem:[%s43] sm:$0xff]
  %s45 = scalar_lea.vmem %s1, 72
  %v46 = vld [vmem:[%s45] sm:$0xff]
  %v47 = vperm.slane %v39, 0
  %v48 = vperm.slane %v40, 0
  %v49 = vmul.f32 %v47, %v44
  %v50 = vmul.f32 %v48, %v44
  %v51 = vadd.f32 %v29, %v49
  %v52 = vadd.f32 %v30, %v50
  %v53 = vperm.slane %v41, 0
  %v54 = vperm.slane %v42, 0
  %v55 = vmul.f32 %v53, %v46
  %v56 = vmul.f32 %v54, %v46
  %v57 = vsub.f32 %v51, %v55
  %v58 = vsub.f32 %v52, %v56
  %v59 = vmul.f32 %v47, %v46
  %v60 = vmul.f32 %v48, %v46
  %v61 = vadd.f32 %v37, %v59
  %v62 = vadd.f32 %v38, %v60
  %v63 = vmul.f32 %v53, %v44
  %v64 = vmul.f32 %v54, %v44
  %v65 = vadd.f32 %v61, %v63
  %v66 = vadd.f32 %v62, %v64
  %v67 = vld [vmem:[%s0 + $0x2] sm:$0x1]
  %v68 = vld [vmem:[%s0 + $0xa] sm:$0x1]
  %v69 = vld [vmem:[%s13 + $0x2] sm:$0x1]
  %v70 = vld [vmem:[%s13 + $0xa] sm:$0x1]
  %s71 = scalar_lea.vmem %s1, 16
  %v72 = vld [vmem:[%s71] sm:$0xff]
  %s73 = scalar_lea.vmem %s1, 80
  %v74 = vld [vmem:[%s73] sm:$0xff]
  %v75 = vperm.slane %v67, 0
  %v76 = vperm.slane %v68, 0
  %v77 = vmul.f32 %v75, %v72
  %v78 = vmul.f32 %v76, %v72
  %v79 = vadd.f32 %v57, %v77
  %v80 = vadd.f32 %v58, %v78
  %v81 = vperm.slane %v69, 0
  %v82 = vperm.slane %v70, 0
  %v83 = vmul.f32 %v81, %v74
  %v84 = vmul.f32 %v82, %v74
  %v85 = vsub.f32 %v79, %v83
  %v86 = vsub.f32 %v80, %v84
  %v87 = vmul.f32 %v75, %v74
  %v88 = vmul.f32 %v76, %v74
  %v89 = vadd.f32 %v65, %v87
  %v90 = vadd.f32 %v66, %v88
  %v91 = vmul.f32 %v81, %v72
  %v92 = vmul.f32 %v82, %v72
  %v93 = vadd.f32 %v89, %v91
  %v94 = vadd.f32 %v90, %v92
  %v95 = vld [vmem:[%s0 + $0x3] sm:$0x1]
  %v96 = vld [vmem:[%s0 + $0xb] sm:$0x1]
  %v97 = vld [vmem:[%s13 + $0x3] sm:$0x1]
  %v98 = vld [vmem:[%s13 + $0xb] sm:$0x1]
  %s99 = scalar_lea.vmem %s1, 24
  %v100 = vld [vmem:[%s99] sm:$0xff]
  %s101 = scalar_lea.vmem %s1, 88
  %v102 = vld [vmem:[%s101] sm:$0xff]
  %v103 = vperm.slane %v95, 0
  %v104 = vperm.slane %v96, 0
  %v105 = vmul.f32 %v103, %v100
  %v106 = vmul.f32 %v104, %v100
  %v107 = vadd.f32 %v85, %v105
  %v108 = vadd.f32 %v86, %v106
  %v109 = vperm.slane %v97, 0
  %v110 = vperm.slane %v98, 0
  %v111 = vmul.f32 %v109, %v102
  %v112 = vmul.f32 %v110, %v102
  %v113 = vsub.f32 %v107, %v111
  %v114 = vsub.f32 %v108, %v112
  %v115 = vmul.f32 %v103, %v102
  %v116 = vmul.f32 %v104, %v102
  %v117 = vadd.f32 %v93, %v115
  %v118 = vadd.f32 %v94, %v116
  %v119 = vmul.f32 %v109, %v100
  %v120 = vmul.f32 %v110, %v100
  %v121 = vadd.f32 %v117, %v119
  %v122 = vadd.f32 %v118, %v120
  %v123 = vld [vmem:[%s0 + $0x4] sm:$0x1]
  %v124 = vld [vmem:[%s0 + $0xc] sm:$0x1]
  %v125 = vld [vmem:[%s13 + $0x4] sm:$0x1]
  %v126 = vld [vmem:[%s13 + $0xc] sm:$0x1]
  %s127 = scalar_lea.vmem %s1, 32
  %v128 = vld [vmem:[%s127] sm:$0xff]
  %s129 = scalar_lea.vmem %s1, 96
  %v130 = vld [vmem:[%s129] sm:$0xff]
  %v131 = vperm.slane %v123, 0
  %v132 = vperm.slane %v124, 0
  %v133 = vmul.f32 %v131, %v128
  %v134 = vmul.f32 %v132, %v128
  %v135 = vadd.f32 %v113, %v133
  %v136 = vadd.f32 %v114, %v134
  %v137 = vperm.slane %v125, 0
  %v138 = vperm.slane %v126, 0
  %v139 = vmul.f32 %v137, %v130
  %v140 = vmul.f32 %v138, %v130
  %v141 = vsub.f32 %v135, %v139
  %v142 = vsub.f32 %v136, %v140
  %v143 = vmul.f32 %v131, %v130
  %v144 = vmul.f32 %v132, %v130
  %v145 = vadd.f32 %v121, %v143
  %v146 = vadd.f32 %v122, %v144
  %v147 = vmul.f32 %v137, %v128
  %v148 = vmul.f32 %v138, %v128
  %v149 = vadd.f32 %v145, %v147
  %v150 = vadd.f32 %v146, %v148
  %v151 = vld [vmem:[%s0 + $0x5] sm:$0x1]
  %v152 = vld [vmem:[%s0 + $0xd] sm:$0x1]
  %v153 = vld [vmem:[%s13 + $0x5] sm:$0x1]
  %v154 = vld [vmem:[%s13 + $0xd] sm:$0x1]
  %s155 = scalar_lea.vmem %s1, 40
  %v156 = vld [vmem:[%s155] sm:$0xff]
  %s157 = scalar_lea.vmem %s1, 104
  %v158 = vld [vmem:[%s157] sm:$0xff]
  %v159 = vperm.slane %v151, 0
  %v160 = vperm.slane %v152, 0
  %v161 = vmul.f32 %v159, %v156
  %v162 = vmul.f32 %v160, %v156
  %v163 = vadd.f32 %v141, %v161
  %v164 = vadd.f32 %v142, %v162
  %v165 = vperm.slane %v153, 0
  %v166 = vperm.slane %v154, 0
  %v167 = vmul.f32 %v165, %v158
  %v168 = vmul.f32 %v166, %v158
  %v169 = vsub.f32 %v163, %v167
  %v170 = vsub.f32 %v164, %v168
  %v171 = vmul.f32 %v159, %v158
  %v172 = vmul.f32 %v160, %v158
  %v173 = vadd.f32 %v149, %v171
  %v174 = vadd.f32 %v150, %v172
  %v175 = vmul.f32 %v165, %v156
  %v176 = vmul.f32 %v166, %v156
  %v177 = vadd.f32 %v173, %v175
  %v178 = vadd.f32 %v174, %v176
  %v179 = vld [vmem:[%s0 + $0x6] sm:$0x1]
  %v180 = vld [vmem:[%s0 + $0xe] sm:$0x1]
  %v181 = vld [vmem:[%s13 + $0x6] sm:$0x1]
  %v182 = vld [vmem:[%s13 + $0xe] sm:$0x1]
  %s183 = scalar_lea.vmem %s1, 48
  %v184 = vld [vmem:[%s183] sm:$0xff]
  %s185 = scalar_lea.vmem %s1, 112
  %v186 = vld [vmem:[%s185] sm:$0xff]
  %v187 = vperm.slane %v179, 0
  %v188 = vperm.slane %v180, 0
  %v189 = vmul.f32 %v187, %v184
  %v190 = vmul.f32 %v188, %v184
  %v191 = vadd.f32 %v169, %v189
  %v192 = vadd.f32 %v170, %v190
  %v193 = vperm.slane %v181, 0
  %v194 = vperm.slane %v182, 0
  %v195 = vmul.f32 %v193, %v186
  %v196 = vmul.f32 %v194, %v186
  %v197 = vsub.f32 %v191, %v195
  %v198 = vsub.f32 %v192, %v196
  %v199 = vmul.f32 %v187, %v186
  %v200 = vmul.f32 %v188, %v186
  %v201 = vadd.f32 %v177, %v199
  %v202 = vadd.f32 %v178, %v200
  %v203 = vmul.f32 %v193, %v184
  %v204 = vmul.f32 %v194, %v184
  %v205 = vadd.f32 %v201, %v203
  %v206 = vadd.f32 %v202, %v204
  %v207 = vld [vmem:[%s0 + $0x7] sm:$0x1]
  %v208 = vld [vmem:[%s0 + $0xf] sm:$0x1]
  %v209 = vld [vmem:[%s13 + $0x7] sm:$0x1]
  %v210 = vld [vmem:[%s13 + $0xf] sm:$0x1]
  %s211 = scalar_lea.vmem %s1, 56
  %v212 = vld [vmem:[%s211] sm:$0xff]
  %s213 = scalar_lea.vmem %s1, 120
  %v214 = vld [vmem:[%s213] sm:$0xff]
  %v215 = vperm.slane %v207, 0
  %v216 = vperm.slane %v208, 0
  %v217 = vmul.f32 %v215, %v212
  %v218 = vmul.f32 %v216, %v212
  %v219 = vadd.f32 %v197, %v217
  %v220 = vadd.f32 %v198, %v218
  %v221 = vperm.slane %v209, 0
  %v222 = vperm.slane %v210, 0
  %v223 = vmul.f32 %v221, %v214
  %v224 = vmul.f32 %v222, %v214
  %v225 = vsub.f32 %v219, %v223
  %v226 = vsub.f32 %v220, %v224
  %v227 = vmul.f32 %v215, %v214
  %v228 = vmul.f32 %v216, %v214
  %v229 = vadd.f32 %v205, %v227
  %v230 = vadd.f32 %v206, %v228
  %v231 = vmul.f32 %v221, %v212
  %v232 = vmul.f32 %v222, %v212
  %v233 = vadd.f32 %v229, %v231
  %v234 = vadd.f32 %v230, %v232
  %235 = vst [vmem:[%s2] sm:$0xff] %v225
  %236 = vst [vmem:[%s2 + $0x8] sm:$0xff] %v226
  %s237 = scalar_lea.vmem %s2, 16
  %238 = vst [vmem:[%s237] sm:$0xff] %v233
  %239 = vst [vmem:[%s237 + $0x8] sm:$0xff] %v234
  // Predicated region
  $region10: #{spectral_conv2d.1} parent=0 // pred_check
    _
  $region11: #{spectral_conv2d.1} parent=0 // pred_check_branch
    %241 = sbr.rel (0) target = $region13
  $region12: #{spectral_conv2d.1} parent=0 // pred_region
    _
  $region13: #{spectral_conv2d.1} parent=0 // pred_fallthru
    _
  // Predicated region
  $region14: #{spectral_conv2d.1} parent=0 // pred_check
    _
  $region15: #{spectral_conv2d.1} parent=0 // pred_check_branch
    %243 = sbr.rel (0) target = $region17
  $region16: #{spectral_conv2d.1} parent=0 // pred_region
    _
  $region17: #{spectral_conv2d.1} parent=0 // pred_fallthru
    _

// kernel: reverse.0
$region0: #{reverse.0}
  %s0 = inlined_call_operand.vmem [shape: f32[2,8,16,7], index: 0, kind: input, shape index: {}]
  %s1 = inlined_call_operand.vmem [shape: f32[2,8,16,7], index: 1, kind: output, shape index: {}]
  $region1: #{reverse.0} parent=0
    #allocation0 [shape = 'u8[131072]{0}', space=vmem, size = 0x20000, scoped, tag = 'operand span for operand 0']
    #allocation1 [shape = 'u8[65536]{0}', space=vmem, size = 0x10000, scoped, tag = 'operand span for operand 1']
    %s2 = scalar_lea.vmem [#allocation0], 8
    // Predicated region
    $region2: #{reverse.0} parent=1 // pred_check
      _
    $region3: #{reverse.0} parent=1 // pred_check_branch
      %4 = sbr.rel (0) target = $region5
    $region4: #{reverse.0} parent=1 // pred_region
      // Predicated region
      $region6: #{reverse.0} parent=4 // pred_check
        _
      $region7: #{reverse.0} parent=4 // pred_check_branch
        %6 = sbr.rel (0) target = $region9
      $region8: #{reverse.0} parent=4 // pred_region
        // Predicated region
        $region21: #{reverse.0} parent=8 // pred_check
          _
        $region22: #{reverse.0} parent=8 // pred_check_branch
          %52 = sbr.rel (0) target = $region24
        $region23: #{reverse.0} parent=8 // pred_region
          loop: start=0, step=1, limit=1
          $region25: #{reverse.0} parent=23 // loop_pre_header
            _
          $region26: #{reverse.0} parent=23 // loop_header
            %s54 = sphi 0, %s58
            %p55 = scmp.ge.s32.totalorder %s54, 1
            %s59 = sphi %s0, %s0
            %s60 = sphi %s2, %s2
          $region27: #{reverse.0} parent=23 // loop_header_branch
            %57 = sbr.rel (%p55) target = $region31
          $region28: #{reverse.0} parent=23 // loop_body
            %v61 = vld [vmem:[%s59] sm:$0xff]
            %62 = vst [vmem:[%s60] sm:$0xff] %v61
            %v63 = vld [vmem:[%s59 + $0x8] sm:$0xff]
            %64 = vst [vmem:[%s60 + $0x10] sm:$0xff] %v63
            %v65 = vld [vmem:[%s59 + $0x10] sm:$0xff]
            %66 = vst [vmem:[%s60 + $0x20] sm:$0xff] %v65
            %v67 = vld [vmem:[%s59 + $0x18] sm:$0xff]
            %68 = vst [vmem:[%s60 + $0x30] sm:$0xff] %v67
            %v69 = vld [vmem:[%s59 + $0x20] sm:$0xff]
            %70 = vst [vmem:[%s60 + $0x40] sm:$0xff] %v69
            %v71 = vld [vmem:[%s59 + $0x28] sm:$0xff]
            %72 = vst [vmem:[%s60 + $0x50] sm:$0xff] %v71
            %v73 = vld [vmem:[%s59 + $0x30] sm:$0xff]
            %74 = vst [vmem:[%s60 + $0x60] sm:$0xff] %v73
            %v75 = vld [vmem:[%s59 + $0x38] sm:$0xff]
            %76 = vst [vmem:[%s60 + $0x70] sm:$0xff] %v75
            %v77 = vld [vmem:[%s59 + $0x40] sm:$0xff]
            %78 = vst [vmem:[%s60 + $0x80] sm:$0xff] %v77
            %v79 = vld [vmem:[%s59 + $0x48] sm:$0xff]
            %80 = vst [vmem:[%s60 + $0x90] sm:$0xff] %v79
            %v81 = vld [vmem:[%s59 + $0x50] sm:$0xff]
            %82 = vst [vmem:[%s60 + $0xa0] sm:$0xff] %v81
            %v83 = vld [vmem:[%s59 + $0x58] sm:$0xff]
            %84 = vst [vmem:[%s60 + $0xb0] sm:$0xff] %v83
            %v85 = vld [vmem:[%s59 + $0x60] sm:$0xff]
            %86 = vst [vmem:[%s60 + $0xc0] sm:$0xff] %v85
            %v87 = vld [vmem:[%s59 + $0x68] sm:$0xff]
            %88 = vst [vmem:[%s60 + $0xd0] sm:$0xff] %v87
            %v89 = vld [vmem:[%s59 + $0x70] sm:$0xff]
            %90 = vst [vmem:[%s60 + $0xe0] sm:$0xff] %v89
            %v91 = vld [vmem:[%s59 + $0x78] sm:$0xff]
            %92 = vst [vmem:[%s60 + $0xf0] sm:$0xff] %v91
          $region29: #{reverse.0} parent=23 // loop_footer
            %s58 = sadd.s32 1, %s54
          $region30: #{reverse.0} parent=23 // loop_footer_branch
            %53 = sbr.rel target = $region26
          $region31: #{reverse.0} parent=23 // loop_exit
            _
        $region24: #{reverse.0} parent=8 // pred_fallthru
          _
        // Predicated region
        $region32: #{reverse.0} parent=8 // pred_check
          _
        $region33: #{reverse.0} parent=8 // pred_check_branch
          %94 = sbr.rel target = $region35
        $region34: #{reverse.0} parent=8 // pred_region
          _
        $region35: #{reverse.0} parent=8 // pred_fallthru
          _
      $region9: #{reverse.0} parent=4 // pred_fallthru
        _
      // Predicated region
      $region10: #{reverse.0} parent=4 // pred_check
        _
      $region11: #{reverse.0} parent=4 // pred_check_branch
        %8 = sbr.rel target = $region13
      $region12: #{reverse.0} parent=4 // pred_region
        %s10 = ssub.s32 256, 1
        loop: start=0, step=1, limit=1
        $region14: #{reverse.0} parent=12 // loop_pre_header
          _
        $region15: #{reverse.0} parent=12 // loop_header
          %s12 = sphi 0, %s16
          %p13 = scmp.ge.s32.totalorder %s12, 1
          %s17 = sphi %s0, %s0
          %s18 = sphi %s2, %s2
        $region16: #{reverse.0} parent=12 // loop_header_branch
          %15 = sbr.rel (%p13) target = $region20
        $region17: #{reverse.0} parent=12 // loop_body
          %v19 = vld [vmem:[%s17] sm:%s10]
          %20 = vst [vmem:[%s18] sm:%s10] %v19
          %v21 = vld [vmem:[%s17 + $0x8] sm:%s10]
          %22 = vst [vmem:[%s18 + $0x10] sm:%s10] %v21
          %v23 = vld [vmem:[%s17 + $0x10] sm:%s10]
          %24 = vst [vmem:[%s18 + $0x20] sm:%s10] %v23
          %v25 = vld [vmem:[%s17 + $0x18] sm:%s10]
          %26 = vst [vmem:[%s18 + $0x30] sm:%s10] %v25
          %v27 = vld [vmem:[%s17 + $0x20] sm:%s10]
          %28 = vst [vmem:[%s18 + $0x40] sm:%s10] %v27
          %v29 = vld [vmem:[%s17 + $0x28] sm:%s10]
          %30 = vst [vmem:[%s18 + $0x50] sm:%s10] %v29
          %v31 = vld [vmem:[%s17 + $0x30] sm:%s10]
          %32 = vst [vmem:[%s18 + $0x60] sm:%s10] %v31
          %v33 = vld [vmem:[%s17 + $0x38] sm:%s10]
          %34 = vst [vmem:[%s18 + $0x70] sm:%s10] %v33
          %v35 = vld [vmem:[%s17 + $0x40] sm:%s10]
          %36 = vst [vmem:[%s18 + $0x80] sm:%s10] %v35
          %v37 = vld [vmem:[%s17 + $0x48] sm:%s10]
          %38 = vst [vmem:[%s18 + $0x90] sm:%s10] %v37
          %v39 = vld [vmem:[%s17 + $0x50] sm:%s10]
          %40 = vst [vmem:[%s18 + $0xa0] sm:%s10] %v39
          %v41 = vld [vmem:[%s17 + $0x58] sm:%s10]
          %42 = vst [vmem:[%s18 + $0xb0] sm:%s10] %v41
          %v43 = vld [vmem:[%s17 + $0x60] sm:%s10]
          %44 = vst [vmem:[%s18 + $0xc0] sm:%s10] %v43
          %v45 = vld [vmem:[%s17 + $0x68] sm:%s10]
          %46 = vst [vmem:[%s18 + $0xd0] sm:%s10] %v45
          %v47 = vld [vmem:[%s17 + $0x70] sm:%s10]
          %48 = vst [vmem:[%s18 + $0xe0] sm:%s10] %v47
          %v49 = vld [vmem:[%s17 + $0x78] sm:%s10]
          %50 = vst [vmem:[%s18 + $0xf0] sm:%s10] %v49
        $region18: #{reverse.0} parent=12 // loop_footer
          %s16 = sadd.s32 1, %s12
        $region19: #{reverse.0} parent=12 // loop_footer_branch
          %11 = sbr.rel target = $region15
        $region20: #{reverse.0} parent=12 // loop_exit
          _
      $region13: #{reverse.0} parent=4 // pred_fallthru
        _
    $region5: #{reverse.0} parent=1 // pred_fallthru
      _
    %95 = vnop
    %s96 = scalar_lea.vmem [#allocation0], 7
    %v97 = vld [vmem:[%s96] ss:$-1 sm:$0xff]
    %v98 = vrot.slane %v97, 1
    %99 = vst [vmem:[#allocation1] sm:$0xff] %v98
    %s100 = scalar_lea.vmem [#allocation0], 8
    %s101 = scalar_lea.vmem %s100, 7 [#allocation0]
    %v102 = vld [vmem:[%s101] ss:$-1 sm:$0xff]
    %v103 = vrot.slane %v102, 1
    %v104 = vlaneseq
    %v105 = vshrl.u32 %v104, 7
    %vm106 = vcmp.lt.s32.totalorder %v105, 7
    %107 = vst.msk [vmem:[#allocation1] sm:$0xff] %vm106, %v103
    %s108 = scalar_lea.vmem [#allocation1], 8
    %s109 = scalar_lea.vmem [#allocation0], 16
    %s110 = scalar_lea.vmem %s109, 7 [#allocation0]
    %v111 = vld [vmem:[%s110] ss:$-1 sm:$0xff]
    %v112 = vrot.slane %v111, 1
    %113 = vst [vmem:[%s108] sm:$0xff] %v112
    %s114 = scalar_lea.vmem %s109, 8 [#allocation0]
    %s115 = scalar_lea.vmem %s114, 7 [#allocation0]
    %v116 = vld [vmem:[%s115] ss:$-1 sm:$0xff]
    %v117 = vrot.slane %v116, 1
    %v118 = vlaneseq
    %v119 = vshrl.u32 %v118, 7
    %vm120 = vcmp.lt.s32.totalorder %v119, 7
    %121 = vst.msk [vmem:[%s108] sm:$0xff] %vm120, %v117
    %s122 = scalar_lea.vmem [#allocation1], 16
    %s123 = scalar_lea.vmem [#allocation0], 32
    %s124 = scalar_lea.vmem %s123, 7 [#allocation0]
    %v125 = vld [vmem:[%s124] ss:$-1 sm:$0xff]
    %v126 = vrot.slane %v125, 1
    %127 = vst [vmem:[%s122] sm:$0xff] %v126
    %s128 = scalar_lea.vmem %s123, 8 [#allocation0]
    %s129 = scalar_lea.vmem %s128, 7 [#allocation0]
    %v130 = vld [vmem:[%s129] ss:$-1 sm:$0xff]
    %v131 = vrot.slane %v130, 1
    %v132 = vlaneseq
    %v133 = vshrl.u32 %v132, 7
    %vm134 = vcmp.lt.s32.totalorder %v133, 7
    %135 = vst.msk [vmem:[%s122] sm:$0xff] %vm134, %v131
    %s136 = scalar_lea.vmem [#allocation1], 24
    %s137 = scalar_lea.vmem [#allocation0], 48
    %s138 = scalar_lea.vmem %s137, 7 [#allocation0]
    %v139 = vld [vmem:[%s138] ss:$-1 sm:$0xff]
    %v140 = vrot.slane %v139, 1
    %141 = vst [vmem:[%s136] sm:$0xff] %v140
    %s142 = scalar_lea.vmem %s137, 8 [#allocation0]
    %s143 = scalar_lea.vmem %s142, 7 [#allocation0]
    %v144 = vld [vmem:[%s143] ss:$-1 sm:$0xff]
    %v145 = vrot.slane %v144, 1
    %v146 = vlaneseq
    %v147 = vshrl.u32 %v146, 7
    %vm148 = vcmp.lt.s32.totalorder %v147, 7
    %149 = vst.msk [vmem:[%s136] sm:$0xff] %vm148, %v145
    %s150 = scalar_lea.vmem [#allocation1], 32
    %s151 = scalar_lea.vmem [#allocation0], 64
    %s152 = scalar_lea.vmem %s151, 7 [#allocation0]
    %v153 = vld [vmem:[%s152] ss:$-1 sm:$0xff]
    %v154 = vrot.slane %v153, 1
    %155 = vst [vmem:[%s150] sm:$0xff] %v154
    %s156 = scalar_lea.vmem %s151, 8 [#allocation0]
    %s157 = scalar_lea.vmem %s156, 7 [#allocation0]
    %v158 = vld [vmem:[%s157] ss:$-1 sm:$0xff]
    %v159 = vrot.slane %v158, 1
    %v160 = vlaneseq
    %v161 = vshrl.u32 %v160, 7
    %vm162 = vcmp.lt.s32.totalorder %v161, 7
    %163 = vst.msk [vmem:[%s150] sm:$0xff] %vm162, %v159
    %s164 = scalar_lea.vmem [#allocation1], 40
    %s165 = scalar_lea.vmem [#allocation0], 80
    %s166 = scalar_lea.vmem %s165, 7 [#allocation0]
    %v167 = vld [vmem:[%s166] ss:$-1 sm:$0xff]
    %v168 = vrot.slane %v167, 1
    %169 = vst [vmem:[%s164] sm:$0xff] %v168
    %s170 = scalar_lea.vmem %s165, 8 [#allocation0]
    %s171 = scalar_lea.vmem %s170, 7 [#allocation0]
    %v172 = vld [vmem:[%s171] ss:$-1 sm:$0xff]
    %v173 = vrot.slane %v172, 1
    %v174 = vlaneseq
    %v175 = vshrl.u32 %v174, 7
    %vm176 = vcmp.lt.s32.totalorder %v175, 7
    %177 = vst.msk [vmem:[%s164] sm:$0xff] %vm176, %v173
    %s178 = scalar_lea.vmem [#allocation1], 48
    %s179 = scalar_lea.vmem [#allocation0], 96
    %s180 = scalar_lea.vmem %s179, 7 [#allocation0]
    %v181 = vld [vmem:[%s180] ss:$-1 sm:$0xff]
    %v182 = vrot.slane %v181, 1
    %183 = vst [vmem:[%s178] sm:$0xff] %v182
    %s184 = scalar_lea.vmem %s179, 8 [#allocation0]
    %s185 = scalar_lea.vmem %s184, 7 [#allocation0]
    %v186 = vld [vmem:[%s185] ss:$-1 sm:$0xff]
    %v187 = vrot.slane %v186, 1
    %v188 = vlaneseq
    %v189 = vshrl.u32 %v188, 7
    %vm190 = vcmp.lt.s32.totalorder %v189, 7
    %191 = vst.msk [vmem:[%s178] sm:$0xff] %vm190, %v187
    %s192 = scalar_lea.vmem [#allocation1], 56
    %s193 = scalar_lea.vmem [#allocation0], 112
    %s194 = scalar_lea.vmem %s193, 7 [#allocation0]
    %v195 = vld [vmem:[%s194] ss:$-1 sm:$0xff]
    %v196 = vrot.slane %v195, 1
    %197 = vst [vmem:[%s192] sm:$0xff] %v196
    %s198 = scalar_lea.vmem %s193, 8 [#allocation0]
    %s199 = scalar_lea.vmem %s198, 7 [#allocation0]
    %v200 = vld [vmem:[%s199] ss:$-1 sm:$0xff]
    %v201 = vrot.slane %v200, 1
    %v202 = vlaneseq
    %v203 = vshrl.u32 %v202, 7
    %vm204 = vcmp.lt.s32.totalorder %v203, 7
    %205 = vst.msk [vmem:[%s192] sm:$0xff] %vm204, %v201
    %s206 = scalar_lea.vmem [#allocation1], 64
    %s207 = scalar_lea.vmem [#allocation0], 128
    %s208 = scalar_lea.vmem %s207, 7 [#allocation0]
    %v209 = vld [vmem:[%s208] ss:$-1 sm:$0xff]
    %v210 = vrot.slane %v209, 1
    %211 = vst [vmem:[%s206] sm:$0xff] %v210
    %s212 = scalar_lea.vmem %s207, 8 [#allocation0]
    %s213 = scalar_lea.vmem %s212, 7 [#allocation0]
    %v214 = vld [vmem:[%s213] ss:$-1 sm:$0xff]
    %v215 = vrot.slane %v214, 1
    %v216 = vlaneseq
    %v217 = vshrl.u32 %v216, 7
    %vm218 = vcmp.lt.s32.totalorder %v217, 7
    %219 = vst.msk [vmem:[%s206] sm:$0xff] %vm218, %v215
    %s220 = scalar_lea.vmem [#allocation1], 72
    %s221 = scalar_lea.vmem [#allocation0], 144
    %s222 = scalar_lea.vmem %s221, 7 [#allocation0]
    %v223 = vld [vmem:[%s222] ss:$-1 sm:$0xff]
    %v224 = vrot.slane %v223, 1
    %225 = vst [vmem:[%s220] sm:$0xff] %v224
    %s226 = scalar_lea.vmem %s221, 8 [#allocation0]
    %s227 = scalar_lea.vmem %s226, 7 [#allocation0]
    %v228 = vld [vmem:[%s227] ss:$-1 sm:$0xff]
    %v229 = vrot.slane %v228, 1
    %v230 = vlaneseq
    %v231 = vshrl.u32 %v230, 7
    %vm232 = vcmp.lt.s32.totalorder %v231, 7
    %233 = vst.msk [vmem:[%s220] sm:$0xff] %vm232, %v229
    %s234 = scalar_lea.vmem [#allocation1], 80
    %s235 = scalar_lea.vmem [#allocation0], 160
    %s236 = scalar_lea.vmem %s235, 7 [#allocation0]
    %v237 = vld [vmem:[%s236] ss:$-1 sm:$0xff]
    %v238 = vrot.slane %v237, 1
    %239 = vst [vmem:[%s234] sm:$0xff] %v238
    %s240 = scalar_lea.vmem %s235, 8 [#allocation0]
    %s241 = scalar_lea.vmem %s240, 7 [#allocation0]
    %v242 = vld [vmem:[%s241] ss:$-1 sm:$0xff]
    %v243 = vrot.slane %v242, 1
    %v244 = vlaneseq
    %v245 = vshrl.u32 %v244, 7
    %vm246 = vcmp.lt.s32.totalorder %v245, 7
    %247 = vst.msk [vmem:[%s234] sm:$0xff] %vm246, %v243
    %s248 = scalar_lea.vmem [#allocation1], 88
    %s249 = scalar_lea.vmem [#allocation0], 176
    %s250 = scalar_lea.vmem %s249, 7 [#allocation0]
    %v251 = vld [vmem:[%s250] ss:$-1 sm:$0xff]
    %v252 = vrot.slane %v251, 1
    %253 = vst [vmem:[%s248] sm:$0xff] %v252
    %s254 = scalar_lea.vmem %s249, 8 [#allocation0]
    %s255 = scalar_lea.vmem %s254, 7 [#allocation0]
    %v256 = vld [vmem:[%s255] ss:$-1 sm:$0xff]
    %v257 = vrot.slane %v256, 1
    %v258 = vlaneseq
    %v259 = vshrl.u32 %v258, 7
    %vm260 = vcmp.lt.s32.totalorder %v259, 7
    %261 = vst.msk [vmem:[%s248] sm:$0xff] %vm260, %v257
    %s262 = scalar_lea.vmem [#allocation1], 96
    %s263 = scalar_lea.vmem [#allocation0], 192
    %s264 = scalar_lea.vmem %s263, 7 [#allocation0]
    %v265 = vld [vmem:[%s264] ss:$-1 sm:$0xff]
    %v266 = vrot.slane %v265, 1
    %267 = vst [vmem:[%s262] sm:$0xff] %v266
    %s268 = scalar_lea.vmem %s263, 8 [#allocation0]
    %s269 = scalar_lea.vmem %s268, 7 [#allocation0]
    %v270 = vld [vmem:[%s269] ss:$-1 sm:$0xff]
    %v271 = vrot.slane %v270, 1
    %v272 = vlaneseq
    %v273 = vshrl.u32 %v272, 7
    %vm274 = vcmp.lt.s32.totalorder %v273, 7
    %275 = vst.msk [vmem:[%s262] sm:$0xff] %vm274, %v271
    %s276 = scalar_lea.vmem [#allocation1], 104
    %s277 = scalar_lea.vmem [#allocation0], 208
    %s278 = scalar_lea.vmem %s277, 7 [#allocation0]
    %v279 = vld [vmem:[%s278] ss:$-1 sm:$0xff]
    %v280 = vrot.slane %v279, 1
    %281 = vst [vmem:[%s276] sm:$0xff] %v280
    %s282 = scalar_lea.vmem %s277, 8 [#allocation0]
    %s283 = scalar_lea.vmem %s282, 7 [#allocation0]
    %v284 = vld [vmem:[%s283] ss:$-1 sm:$0xff]
    %v285 = vrot.slane %v284, 1
    %v286 = vlaneseq
    %v287 = vshrl.u32 %v286, 7
    %vm288 = vcmp.lt.s32.totalorder %v287, 7
    %289 = vst.msk [vmem:[%s276] sm:$0xff] %vm288, %v285
    %s290 = scalar_lea.vmem [#allocation1], 112
    %s291 = scalar_lea.vmem [#allocation0], 224
    %s292 = scalar_lea.vmem %s291, 7 [#allocation0]
    %v293 = vld [vmem:[%s292] ss:$-1 sm:$0xff]
    %v294 = vrot.slane %v293, 1
    %295 = vst [vmem:[%s290] sm:$0xff] %v294
    %s296 = scalar_lea.vmem %s291, 8 [#allocation0]
    %s297 = scalar_lea.vmem %s296, 7 [#allocation0]
    %v298 = vld [vmem:[%s297] ss:$-1 sm:$0xff]
    %v299 = vrot.slane %v298, 1
    %v300 = vlaneseq
    %v301 = vshrl.u32 %v300, 7
    %vm302 = vcmp.lt.s32.totalorder %v301, 7
    %303 = vst.msk [vmem:[%s290] sm:$0xff] %vm302, %v299
    %s304 = scalar_lea.vmem [#allocation1], 120
    %s305 = scalar_lea.vmem [#allocation0], 240
    %s306 = scalar_lea.vmem %s305, 7 [#allocation0]
    %v307 = vld [vmem:[%s306] ss:$-1 sm:$0xff]
    %v308 = vrot.slane %v307, 1
    %309 = vst [vmem:[%s304] sm:$0xff] %v308
    %s310 = scalar_lea.vmem %s305, 8 [#allocation0]
    %s311 = scalar_lea.vmem %s310, 7 [#allocation0]
    %v312 = vld [vmem:[%s311] ss:$-1 sm:$0xff]
    %v313 = vrot.slane %v312, 1
    %v314 = vlaneseq
    %v315 = vshrl.u32 %v314, 7
    %vm316 = vcmp.lt.s32.totalorder %v315, 7
    %317 = vst.msk [vmem:[%s304] sm:$0xff] %vm316, %v313
    // Predicated region
    $region36: #{reverse.0} parent=1 // pred_check
      _
    $region37: #{reverse.0} parent=1 // pred_check_branch
      %319 = sbr.rel (0) target = $region39
    $region38: #{reverse.0} parent=1 // pred_region
      // Predicated region
      $region40: #{reverse.0} parent=38 // pred_check
        _
      $region41: #{reverse.0} parent=38 // pred_check_branch
        %321 = sbr.rel (0) target = $region43
      $region42: #{reverse.0} parent=38 // pred_region
        // Predicated region
        $region55: #{reverse.0} parent=42 // pred_check
          _
        $region56: #{reverse.0} parent=42 // pred_check_branch
          %367 = sbr.rel (0) target = $region58
        $region57: #{reverse.0} parent=42 // pred_region
          loop: start=0, step=1, limit=1
          $region59: #{reverse.0} parent=57 // loop_pre_header
            _
          $region60: #{reverse.0} parent=57 // loop_header
            %s369 = sphi 0, %s373
            %p370 = scmp.ge.s32.totalorder %s369, 1
            %s374 = sphi [#allocation1], [#allocation1]
            %s375 = sphi %s1, %s1
          $region61: #{reverse.0} parent=57 // loop_header_branch
            %372 = sbr.rel (%p370) target = $region65
          $region62: #{reverse.0} parent=57 // loop_body
            %v376 = vld [vmem:[%s374] sm:$0xff]
            %377 = vst [vmem:[%s375] sm:$0xff] %v376
            %v378 = vld [vmem:[%s374 + $0x8] sm:$0xff]
            %379 = vst [vmem:[%s375 + $0x8] sm:$0xff] %v378
            %v380 = vld [vmem:[%s374 + $0x10] sm:$0xff]
            %381 = vst [vmem:[%s375 + $0x10] sm:$0xff] %v380
            %v382 = vld [vmem:[%s374 + $0x18] sm:$0xff]
            %383 = vst [vmem:[%s375 + $0x18] sm:$0xff] %v382
            %v384 = vld [vmem:[%s374 + $0x20] sm:$0xff]
            %385 = vst [vmem:[%s375 + $0x20] sm:$0xff] %v384
            %v386 = vld [vmem:[%s374 + $0x28] sm:$0xff]
            %387 = vst [vmem:[%s375 + $0x28] sm:$0xff] %v386
            %v388 = vld [vmem:[%s374 + $0x30] sm:$0xff]
            %389 = vst [vmem:[%s375 + $0x30] sm:$0xff] %v388
            %v390 = vld [vmem:[%s374 + $0x38] sm:$0xff]
            %391 = vst [vmem:[%s375 + $0x38] sm:$0xff] %v390
            %v392 = vld [vmem:[%s374 + $0x40] sm:$0xff]
            %393 = vst [vmem:[%s375 + $0x40] sm:$0xff] %v392
            %v394 = vld [vmem:[%s374 + $0x48] sm:$0xff]
            %395 = vst [vmem:[%s375 + $0x48] sm:$0xff] %v394
            %v396 = vld [vmem:[%s374 + $0x50] sm:$0xff]
            %397 = vst [vmem:[%s375 + $0x50] sm:$0xff] %v396
            %v398 = vld [vmem:[%s374 + $0x58] sm:$0xff]
            %399 = vst [vmem:[%s375 + $0x58] sm:$0xff] %v398
            %v400 = vld [vmem:[%s374 + $0x60] sm:$0xff]
            %401 = vst [vmem:[%s375 + $0x60] sm:$0xff] %v400
            %v402 = vld [vmem:[%s374 + $0x68] sm:$0xff]
            %403 = vst [vmem:[%s375 + $0x68] sm:$0xff] %v402
            %v404 = vld [vmem:[%s374 + $0x70] sm:$0xff]
            %405 = vst [vmem:[%s375 + $0x70] sm:$0xff] %v404
            %v406 = vld [vmem:[%s374 + $0x78] sm:$0xff]
            %407 = vst [vmem:[%s375 + $0x78] sm:$0xff] %v406
          $region63: #{reverse.0} parent=57 // loop_footer
            %s373 = sadd.s32 1, %s369
          $region64: #{reverse.0} parent=57 // loop_footer_branch
            %368 = sbr.rel target = $region60
          $region65: #{reverse.0} parent=57 // loop_exit
            _
        $region58: #{reverse.0} parent=42 // pred_fallthru
          _
        // Predicated region
        $region66: #{reverse.0} parent=42 // pred_check
          _
        $region67: #{reverse.0} parent=42 // pred_check_branch
          %409 = sbr.rel target = $region69
        $region68: #{reverse.0} parent=42 // pred_region
          _
        $region69: #{reverse.0} parent=42 // pred_fallthru
          _
      $region43: #{reverse.0} parent=38 // pred_fallthru
        _
      // Predicated region
      $region44: #{reverse.0} parent=38 // pred_check
        _
      $region45: #{reverse.0} parent=38 // pred_check_branch
        %323 = sbr.rel target = $region47
      $region46: #{reverse.0} parent=38 // pred_region
        %s325 = ssub.s32 256, 1
        loop: start=0, step=1, limit=1
        $region48: #{reverse.0} parent=46 // loop_pre_header
          _
        $region49: #{reverse.0} parent=46 // loop_header
          %s327 = sphi 0, %s331
          %p328 = scmp.ge.s32.totalorder %s327, 1
          %s332 = sphi [#allocation1], [#allocation1]
          %s333 = sphi %s1, %s1
        $region50: #{reverse.0} parent=46 // loop_header_branch
          %330 = sbr.rel (%p328) target = $region54
        $region51: #{reverse.0} parent=46 // loop_body
          %v334 = vld [vmem:[%s332] sm:%s325]
          %335 = vst [vmem:[%s333] sm:%s325] %v334
          %v336 = vld [vmem:[%s332 + $0x8] sm:%s325]
          %337 = vst [vmem:[%s333 + $0x8] sm:%s325] %v336
          %v338 = vld [vmem:[%s332 + $0x10] sm:%s325]
          %339 = vst [vmem:[%s333 + $0x10] sm:%s325] %v338
          %v340 = vld [vmem:[%s332 + $0x18] sm:%s325]
          %341 = vst [vmem:[%s333 + $0x18] sm:%s325] %v340
          %v342 = vld [vmem:[%s332 + $0x20] sm:%s325]
          %343 = vst [vmem:[%s333 + $0x20] sm:%s325] %v342
          %v344 = vld [vmem:[%s332 + $0x28] sm:%s325]
          %345 = vst [vmem:[%s333 + $0x28] sm:%s325] %v344
          %v346 = vld [vmem:[%s332 + $0x30] sm:%s325]
          %347 = vst [vmem:[%s333 + $0x30] sm:%s325] %v346
          %v348 = vld [vmem:[%s332 + $0x38] sm:%s325]
          %349 = vst [vmem:[%s333 + $0x38] sm:%s325] %v348
          %v350 = vld [vmem:[%s332 + $0x40] sm:%s325]
          %351 = vst [vmem:[%s333 + $0x40] sm:%s325] %v350
          %v352 = vld [vmem:[%s332 + $0x48] sm:%s325]
          %353 = vst [vmem:[%s333 + $0x48] sm:%s325] %v352
          %v354 = vld [vmem:[%s332 + $0x50] sm:%s325]
          %355 = vst [vmem:[%s333 + $0x50] sm:%s325] %v354
          %v356 = vld [vmem:[%s332 + $0x58] sm:%s325]
          %357 = vst [vmem:[%s333 + $0x58] sm:%s325] %v356
          %v358 = vld [vmem:[%s332 + $0x60] sm:%s325]
          %359 = vst [vmem:[%s333 + $0x60] sm:%s325] %v358
          %v360 = vld [vmem:[%s332 + $0x68] sm:%s325]
          %361 = vst [vmem:[%s333 + $0x68] sm:%s325] %v360
          %v362 = vld [vmem:[%s332 + $0x70] sm:%s325]
          %363 = vst [vmem:[%s333 + $0x70] sm:%s325] %v362
          %v364 = vld [vmem:[%s332 + $0x78] sm:%s325]
          %365 = vst [vmem:[%s333 + $0x78] sm:%s325] %v364
        $region52: #{reverse.0} parent=46 // loop_footer
          %s331 = sadd.s32 1, %s327
        $region53: #{reverse.0} parent=46 // loop_footer_branch
          %326 = sbr.rel target = $region49
        $region54: #{reverse.0} parent=46 // loop_exit
          _
      $region47: #{reverse.0} parent=38 // pred_fallthru
        _
    $region39: #{reverse.0} parent=1 // pred_fallthru
      _
    %410 = vnop

</llo_original>
